<compile_context>
chip_gen: v5e
topology: v5e:2x2
jax: 0.10.0
libtpu: 0.0.40
codegen_flags: <defaults>
</compile_context>

<pallas_src>
import functools

import jax
import jax.numpy as jnp
from jax import lax
from jax.experimental import pallas as pl
from jax.experimental.pallas import tpu as pltpu

NUM_CLASSES = 26  # stand-in for len(AV2_CLASS_NAMES) (not defined in the snippet)


# ----------------------------------------------------------------------------
# Fused Pallas kernel: whole forward pass in one call
# ----------------------------------------------------------------------------
def _make_kernel(T, N, E, num_layers):
    f32 = jnp.float32
    bf16 = jnp.bfloat16

    def kernel(x_ref,      # (T*N, D)   f32  flattened input (T=B, N=L)
               emb_ref,    # (T*N, E)   f32  pre-expanded class embedding
               wi_ref,     # (D, E)     bf16 input_proj weight (pre-transposed)
               bi_ref,     # (1, E)     f32  input_proj bias
               wih_ref,    # (num_layers, E, 4E) bf16  W_ih^T per layer
               whh_ref,    # (num_layers, E, 4E) bf16  W_hh^T per layer
               bl_ref,     # (num_layers, 1, 4E) f32   b_ih + b_hh per layer
               wo_ref,     # (E, OUT_PAD) bf16 output_proj weight (transposed, padded)
               bo_ref,     # (1, OUT_PAD) f32  output_proj bias (padded)
               out_ref,    # (T*N, OUT_PAD) f32
               xa_scr,     # (T*N, E) f32   ping-pong layer activation buffer A
               xb_scr,     # (T*N, E) f32   ping-pong layer activation buffer B
               gx_scr):    # (T*N, 4E) f32  hoisted input-to-hidden gate contributions
        # ---- input_proj + class-embedding add + ReLU (all T*N rows at once) ----
        proj = jnp.dot(x_ref[...].astype(bf16), wi_ref[...],
                       preferred_element_type=f32) + bi_ref[...]
        xa_scr[...] = jnp.maximum(proj + emb_ref[...], 0.0)       # (T*N, E)

        src, dst = xa_scr, xb_scr
        for layer in range(num_layers):                           # static layer loop
            w_ih_t = wih_ref[layer]                               # (E, 4E) bf16
            w_hh_t = whh_ref[layer]                               # (E, 4E) bf16
            b_l = bl_ref[layer]                                   # (1, 4E) f32

            # cuDNN-style hoist: input contribution for ALL time steps at once,
            # staged in VMEM scratch so the recurrence only reads slices.
            gx_scr[...] = jnp.dot(src[...].astype(bf16), w_ih_t,
                                  preferred_element_type=f32) + b_l

            def step(t, carry, _src=src, _dst=dst, _w_hh_t=w_hh_t):
                h, c = carry                                      # f32 (N, E) each
                row = pl.multiple_of(t * N, N)                    # sublane-aligned start
                gates = gx_scr[pl.ds(row, N), :] + jnp.dot(
                    h.astype(bf16), _w_hh_t, preferred_element_type=f32)  # (N, 4E)
                sig = jax.nn.sigmoid(gates)                       # full-vreg EUP op
                th = jnp.tanh(gates)                              # full-vreg EUP op
                i_g = sig[:, 0 * E:1 * E]
                f_g = sig[:, 1 * E:2 * E]
                g_g = th[:, 2 * E:3 * E]
                o_g = sig[:, 3 * E:4 * E]
                c = f_g * c + i_g * g_g
                h = o_g * jnp.tanh(c)
                # residual per layer (dropout = identity in eval mode)
                _dst[pl.ds(row, N), :] = _src[pl.ds(row, N), :] + h
                return h, c

            h0 = jnp.zeros((N, E), f32)
            c0 = jnp.zeros((N, E), f32)
            lax.fori_loop(0, T, step, (h0, c0), unroll=min(max(T, 1), 8))
            src, dst = dst, src                                   # output becomes next input

        # ---- output projection, lane-dense (padded) unmasked store ----
        out = jnp.dot(src[...].astype(bf16), wo_ref[...],
                      preferred_element_type=f32) + bo_ref[...]
        out_ref[...] = out.astype(out_ref.dtype)

    return kernel


def _vmem_spec():
    return pl.BlockSpec(memory_space=pltpu.MemorySpace.VMEM)


def fused_forward(x_flat, emb_full, wi_t, bi, wih_t, whh_t, lstm_b, wo_t, bo,
                  *, T, N, num_layers):
    TN = x_flat.shape[0]
    E = wi_t.shape[1]
    out_pad = wo_t.shape[1]
    kernel = _make_kernel(T, N, E, num_layers)
    return pl.pallas_call(
        kernel,
        out_shape=jax.ShapeDtypeStruct((TN, out_pad), jnp.float32),
        in_specs=[_vmem_spec()] * 9,
        out_specs=_vmem_spec(),
        scratch_shapes=[
            pltpu.VMEM((TN, E), jnp.float32),       # xa
            pltpu.VMEM((TN, E), jnp.float32),       # xb
            pltpu.VMEM((TN, 4 * E), jnp.float32),   # gx
        ],
    )(x_flat, emb_full, wi_t, bi, wih_t, whh_t, lstm_b, wo_t, bo)


# ----------------------------------------------------------------------------
# Parameters (pre-transposed / pre-fused / pre-padded / pre-cast ONCE at init)
# ----------------------------------------------------------------------------
def init_params(key, input_dim, prediction_len, k, num_layers=2, embedding_dim=32):
    E = embedding_dim
    out_dim = 2 * prediction_len * k
    out_pad = ((out_dim + 127) // 128) * 128          # lane-dense output width

    keys = jax.random.split(key, 5 + num_layers)

    # Raw PyTorch-layout parameters (Linear weight is (out_features, in_features)).
    input_proj_w = jax.random.uniform(keys[1], (E, input_dim), jnp.float32, -0.5, 0.5)
    input_proj_b = jax.random.uniform(keys[2], (E,), jnp.float32, -0.1, 0.1)
    output_proj_w = jax.random.uniform(keys[3], (out_dim, E), jnp.float32, -0.2, 0.2)
    output_proj_b = jax.random.uniform(keys[4], (out_dim,), jnp.float32, -0.1, 0.1)

    wih_t, whh_t, lstm_b = [], [], []
    s = 1.0 / jnp.sqrt(E)
    for li in range(num_layers):
        lk = jax.random.split(keys[5 + li], 4)
        w_ih = jax.random.uniform(lk[0], (4 * E, E), jnp.float32, -s, s)
        w_hh = jax.random.uniform(lk[1], (4 * E, E), jnp.float32, -s, s)
        b_ih = jax.random.uniform(lk[2], (4 * E,), jnp.float32, -s, s)
        b_hh = jax.random.uniform(lk[3], (4 * E,), jnp.float32, -s, s)
        wih_t.append(w_ih.T)                           # (E, 4E)
        whh_t.append(w_hh.T)                           # (E, 4E)
        lstm_b.append((b_ih + b_hh).reshape(1, 4 * E)) # fused bias

    # Zero-pad the output projection to a multiple of 128 lanes (sliced outside).
    wo_pad = jnp.zeros((E, out_pad), jnp.float32).at[:, :out_dim].set(output_proj_w.T)
    bo_pad = jnp.zeros((1, out_pad), jnp.float32).at[:, :out_dim].set(output_proj_b)

    return {
        "class_emb": jax.random.normal(keys[0], (NUM_CLASSES, E), jnp.float32),
        # bf16 matmul operands (MXU-native on v5e/v6e/v7x); biases stay f32.
        "input_proj_wt": input_proj_w.T.astype(jnp.bfloat16),   # (D, E)
        "input_proj_b": input_proj_b.reshape(1, E),             # (1, E) f32
        "wih_t": jnp.stack(wih_t).astype(jnp.bfloat16),         # (num_layers, E, 4E)
        "whh_t": jnp.stack(whh_t).astype(jnp.bfloat16),         # (num_layers, E, 4E)
        "lstm_b": jnp.stack(lstm_b),                            # (num_layers, 1, 4E) f32
        "output_proj_wt": wo_pad.astype(jnp.bfloat16),          # (E, out_pad)
        "output_proj_b": bo_pad,                                # (1, out_pad) f32
        "num_layers": num_layers,
        "out_dim": out_dim,
        "k": k,
        "prediction_len": prediction_len,
    }


# ----------------------------------------------------------------------------
# Forward
# ----------------------------------------------------------------------------
def lstm_model_forward(params, x, class_cond=None):
    B, L, D = x.shape
    E = params["input_proj_wt"].shape[1]

    if class_cond is not None:
        emb = jnp.take(params["class_emb"], class_cond.reshape(-1), axis=0)   # (B, E)
    else:
        emb = jnp.zeros((B, E), jnp.float32)
    # Pre-expand per-batch embedding along L (tiny (B*L, E) array; avoids the
    # in-kernel broadcast/concat that scales with B).
    emb_full = jnp.repeat(emb.astype(jnp.float32), L, axis=0)                 # (B*L, E)

    out_padded = fused_forward(
        x.reshape(B * L, D).astype(jnp.float32),
        emb_full,
        params["input_proj_wt"], params["input_proj_b"],
        params["wih_t"], params["whh_t"], params["lstm_b"],
        params["output_proj_wt"], params["output_proj_b"],
        T=B, N=L, num_layers=params["num_layers"],
    )                                                                         # (B*L, out_pad)

    out = out_padded[:, :params["out_dim"]]
    return out.reshape(B, L, params["k"], params["prediction_len"], -1)


# ----------------------------------------------------------------------------
if __name__ == "__main__":
    B, L = 2, 8
    input_dim = 4
    prediction_len = 6
    k = 3
    embedding_dim = 32
    num_layers = 2

    root = jax.random.PRNGKey(0)
    kp, kx, kc = jax.random.split(root, 3)

    params = init_params(kp, input_dim, prediction_len, k,
                         num_layers=num_layers, embedding_dim=embedding_dim)
    x = jax.random.normal(kx, (B, L, input_dim), jnp.float32)
    class_cond = jax.random.randint(kc, (B,), 0, NUM_CLASSES)

    out = lstm_model_forward(params, x, class_cond)
    out = jax.block_until_ready(out)

    assert out.shape == (B, L, k, prediction_len, 2), out.shape
    assert out.dtype == jnp.float32
    assert bool(jnp.all(jnp.isfinite(out)))
    print("KERNEL_OK")
</pallas_src>

<mosaic_0001>
module attributes {stable_mosaic.version = 11 : i64} {
  func.func @kernel(%arg0: memref<16x4xf32, #tpu.memory_space<vmem>>, %arg1: memref<16x32xf32, #tpu.memory_space<vmem>>, %arg2: memref<4x32xbf16, #tpu.memory_space<vmem>>, %arg3: memref<1x32xf32, #tpu.memory_space<vmem>>, %arg4: memref<2x32x128xbf16, #tpu.memory_space<vmem>>, %arg5: memref<2x32x128xbf16, #tpu.memory_space<vmem>>, %arg6: memref<2x1x128xf32, #tpu.memory_space<vmem>>, %arg7: memref<32x128xbf16, #tpu.memory_space<vmem>>, %arg8: memref<1x128xf32, #tpu.memory_space<vmem>>, %arg9: memref<16x128xf32, #tpu.memory_space<vmem>>, %arg10: memref<16x32xf32, #tpu.memory_space<vmem>>, %arg11: memref<16x32xf32, #tpu.memory_space<vmem>>, %arg12: memref<16x128xf32, #tpu.memory_space<vmem>>) attributes {dimension_semantics = [], scalar_prefetch = 0 : i64, scratch_operands = 3 : i64, tpu.core_type = #tpu.core_type<tc>} {
    %c0 = arith.constant 0 : index
    %c0_0 = arith.constant 0 : index
    %0 = vector.load %arg0[%c0, %c0_0] : memref<16x4xf32, #tpu.memory_space<vmem>>, vector<16x4xf32>
    %1 = arith.truncf %0 : vector<16x4xf32> to vector<16x4xbf16>
    %c0_1 = arith.constant 0 : index
    %c0_2 = arith.constant 0 : index
    %2 = vector.load %arg2[%c0_1, %c0_2] : memref<4x32xbf16, #tpu.memory_space<vmem>>, vector<4x32xbf16>
    %cst = arith.constant dense<0.000000e+00> : vector<16x32xf32>
    %3 = tpu.matmul %1, %2, %cst {dimension_numbers = #tpu.dot_dimension_numbers<[1], [0], [0], [1], [0, 0, 1, 1], [], []>} : vector<16x4xbf16>, vector<4x32xbf16>, vector<16x32xf32> -> vector<16x32xf32>
    %c0_3 = arith.constant 0 : index
    %c0_4 = arith.constant 0 : index
    %4 = vector.load %arg3[%c0_3, %c0_4] : memref<1x32xf32, #tpu.memory_space<vmem>>, vector<1x32xf32>
    %5 = vector.broadcast %4 : vector<1x32xf32> to vector<16x32xf32>
    %6 = arith.addf %3, %5 : vector<16x32xf32>
    %c0_5 = arith.constant 0 : index
    %c0_6 = arith.constant 0 : index
    %7 = vector.load %arg1[%c0_5, %c0_6] : memref<16x32xf32, #tpu.memory_space<vmem>>, vector<16x32xf32>
    %8 = arith.addf %6, %7 : vector<16x32xf32>
    %cst_7 = arith.constant 0.000000e+00 : f32
    %9 = vector.broadcast %cst_7 : f32 to vector<16x32xf32>
    %10 = arith.maximumf %8, %9 : vector<16x32xf32>
    %c0_8 = arith.constant 0 : index
    %c0_9 = arith.constant 0 : index
    %11 = vector.load %arg10[%c0_8, %c0_9] : memref<16x32xf32, #tpu.memory_space<vmem>>, vector<16x32xf32>
    tpu.vector_store %arg10[%c0_8, %c0_9], %10 {strides = array<i32>} : memref<16x32xf32, #tpu.memory_space<vmem>>, vector<16x32xf32>,
    %c0_10 = arith.constant 0 : index
    %c0_11 = arith.constant 0 : index
    %c0_12 = arith.constant 0 : index
    %12 = vector.load %arg4[%c0_10, %c0_11, %c0_12] : memref<2x32x128xbf16, #tpu.memory_space<vmem>>, vector<1x32x128xbf16>
    %13 = vector.shape_cast %12 : vector<1x32x128xbf16> to vector<32x128xbf16>
    %c0_13 = arith.constant 0 : index
    %c0_14 = arith.constant 0 : index
    %c0_15 = arith.constant 0 : index
    %14 = vector.load %arg5[%c0_13, %c0_14, %c0_15] : memref<2x32x128xbf16, #tpu.memory_space<vmem>>, vector<1x32x128xbf16>
    %15 = vector.shape_cast %14 : vector<1x32x128xbf16> to vector<32x128xbf16>
    %c0_16 = arith.constant 0 : index
    %c0_17 = arith.constant 0 : index
    %c0_18 = arith.constant 0 : index
    %16 = vector.load %arg6[%c0_16, %c0_17, %c0_18] : memref<2x1x128xf32, #tpu.memory_space<vmem>>, vector<1x1x128xf32>
    %17 = vector.shape_cast %16 : vector<1x1x128xf32> to vector<1x128xf32>
    %c0_19 = arith.constant 0 : index
    %c0_20 = arith.constant 0 : index
    %18 = vector.load %arg10[%c0_19, %c0_20] : memref<16x32xf32, #tpu.memory_space<vmem>>, vector<16x32xf32>
    %19 = arith.truncf %18 : vector<16x32xf32> to vector<16x32xbf16>
    %cst_21 = arith.constant dense<0.000000e+00> : vector<16x128xf32>
    %20 = tpu.matmul %19, %13, %cst_21 {dimension_numbers = #tpu.dot_dimension_numbers<[1], [0], [0], [1], [0, 0, 1, 1], [], []>} : vector<16x32xbf16>, vector<32x128xbf16>, vector<16x128xf32> -> vector<16x128xf32>
    %21 = vector.broadcast %17 : vector<1x128xf32> to vector<16x128xf32>
    %22 = arith.addf %20, %21 : vector<16x128xf32>
    %c0_22 = arith.constant 0 : index
    %c0_23 = arith.constant 0 : index
    %23 = vector.load %arg12[%c0_22, %c0_23] : memref<16x128xf32, #tpu.memory_space<vmem>>, vector<16x128xf32>
    tpu.vector_store %arg12[%c0_22, %c0_23], %22 {strides = array<i32>} : memref<16x128xf32, #tpu.memory_space<vmem>>, vector<16x128xf32>,
    %cst_24 = arith.constant 0.000000e+00 : f32
    %24 = vector.broadcast %cst_24 : f32 to vector<8x32xf32>
    %cst_25 = arith.constant 0.000000e+00 : f32
    %25 = vector.broadcast %cst_25 : f32 to vector<8x32xf32>
    %c0_i32 = arith.constant 0 : i32
    %c8_i32 = arith.constant 8 : i32
    %26 = arith.muli %c0_i32, %c8_i32 : i32
    %27 = tpu.assume_multiple %26, 8 : i32
    %28 = arith.index_cast %27 : i32 to index
    %c0_26 = arith.constant 0 : index
    %29 = vector.load %arg12[%28, %c0_26] : memref<16x128xf32, #tpu.memory_space<vmem>>, vector<8x128xf32>
    %30 = arith.truncf %24 : vector<8x32xf32> to vector<8x32xbf16>
    %cst_27 = arith.constant dense<0.000000e+00> : vector<8x128xf32>
    %31 = tpu.matmul %30, %15, %cst_27 {dimension_numbers = #tpu.dot_dimension_numbers<[1], [0], [0], [1], [0, 0, 1, 1], [], []>} : vector<8x32xbf16>, vector<32x128xbf16>, vector<8x128xf32> -> vector<8x128xf32>
    %32 = arith.addf %29, %31 : vector<8x128xf32>
    %33 = arith.negf %32 : vector<8x128xf32>
    %34 = math.exp %33 : vector<8x128xf32>
    %cst_28 = arith.constant 1.000000e+00 : f32
    %35 = vector.broadcast %cst_28 : f32 to vector<8x128xf32>
    %36 = arith.addf %35, %34 : vector<8x128xf32>
    %37 = arith.divf %35, %36 : vector<8x128xf32>
    %38 = math.tanh %32 : vector<8x128xf32>
    %39 = vector.extract_strided_slice %37 {offsets = [0, 0], sizes = [8, 32], strides = [1, 1]} : vector<8x128xf32> to vector<8x32xf32>
    %40 = vector.extract_strided_slice %37 {offsets = [0, 32], sizes = [8, 32], strides = [1, 1]} : vector<8x128xf32> to vector<8x32xf32>
    %41 = vector.extract_strided_slice %38 {offsets = [0, 64], sizes = [8, 32], strides = [1, 1]} : vector<8x128xf32> to vector<8x32xf32>
    %42 = vector.extract_strided_slice %37 {offsets = [0, 96], sizes = [8, 32], strides = [1, 1]} : vector<8x128xf32> to vector<8x32xf32>
    %43 = arith.mulf %40, %25 : vector<8x32xf32>
    %44 = arith.mulf %39, %41 : vector<8x32xf32>
    %45 = arith.addf %43, %44 : vector<8x32xf32>
    %46 = math.tanh %45 : vector<8x32xf32>
    %47 = arith.mulf %42, %46 : vector<8x32xf32>
    %48 = arith.index_cast %27 : i32 to index
    %c0_29 = arith.constant 0 : index
    %49 = vector.load %arg10[%48, %c0_29] : memref<16x32xf32, #tpu.memory_space<vmem>>, vector<8x32xf32>
    %50 = arith.addf %49, %47 : vector<8x32xf32>
    %51 = arith.index_cast %27 : i32 to index
    %c0_30 = arith.constant 0 : index
    %52 = vector.load %arg11[%51, %c0_30] : memref<16x32xf32, #tpu.memory_space<vmem>>, vector<8x32xf32>
    tpu.vector_store %arg11[%51, %c0_30], %50 {strides = array<i32>} : memref<16x32xf32, #tpu.memory_space<vmem>>, vector<8x32xf32>,
    %c1_i32 = arith.constant 1 : i32
    %c8_i32_31 = arith.constant 8 : i32
    %53 = arith.muli %c1_i32, %c8_i32_31 : i32
    %54 = tpu.assume_multiple %53, 8 : i32
    %55 = arith.index_cast %54 : i32 to index
    %c0_32 = arith.constant 0 : index
    %56 = vector.load %arg12[%55, %c0_32] : memref<16x128xf32, #tpu.memory_space<vmem>>, vector<8x128xf32>
    %57 = arith.truncf %47 : vector<8x32xf32> to vector<8x32xbf16>
    %cst_33 = arith.constant dense<0.000000e+00> : vector<8x128xf32>
    %58 = tpu.matmul %57, %15, %cst_33 {dimension_numbers = #tpu.dot_dimension_numbers<[1], [0], [0], [1], [0, 0, 1, 1], [], []>} : vector<8x32xbf16>, vector<32x128xbf16>, vector<8x128xf32> -> vector<8x128xf32>
    %59 = arith.addf %56, %58 : vector<8x128xf32>
    %60 = arith.negf %59 : vector<8x128xf32>
    %61 = math.exp %60 : vector<8x128xf32>
    %cst_34 = arith.constant 1.000000e+00 : f32
    %62 = vector.broadcast %cst_34 : f32 to vector<8x128xf32>
    %63 = arith.addf %62, %61 : vector<8x128xf32>
    %64 = arith.divf %62, %63 : vector<8x128xf32>
    %65 = math.tanh %59 : vector<8x128xf32>
    %66 = vector.extract_strided_slice %64 {offsets = [0, 0], sizes = [8, 32], strides = [1, 1]} : vector<8x128xf32> to vector<8x32xf32>
    %67 = vector.extract_strided_slice %64 {offsets = [0, 32], sizes = [8, 32], strides = [1, 1]} : vector<8x128xf32> to vector<8x32xf32>
    %68 = vector.extract_strided_slice %65 {offsets = [0, 64], sizes = [8, 32], strides = [1, 1]} : vector<8x128xf32> to vector<8x32xf32>
    %69 = vector.extract_strided_slice %64 {offsets = [0, 96], sizes = [8, 32], strides = [1, 1]} : vector<8x128xf32> to vector<8x32xf32>
    %70 = arith.mulf %67, %45 : vector<8x32xf32>
    %71 = arith.mulf %66, %68 : vector<8x32xf32>
    %72 = arith.addf %70, %71 : vector<8x32xf32>
    %73 = math.tanh %72 : vector<8x32xf32>
    %74 = arith.mulf %69, %73 : vector<8x32xf32>
    %75 = arith.index_cast %54 : i32 to index
    %c0_35 = arith.constant 0 : index
    %76 = vector.load %arg10[%75, %c0_35] : memref<16x32xf32, #tpu.memory_space<vmem>>, vector<8x32xf32>
    %77 = arith.addf %76, %74 : vector<8x32xf32>
    %78 = arith.index_cast %54 : i32 to index
    %c0_36 = arith.constant 0 : index
    %79 = vector.load %arg11[%78, %c0_36] : memref<16x32xf32, #tpu.memory_space<vmem>>, vector<8x32xf32>
    tpu.vector_store %arg11[%78, %c0_36], %77 {strides = array<i32>} : memref<16x32xf32, #tpu.memory_space<vmem>>, vector<8x32xf32>,
    %c2_i32 = arith.constant 2 : i32
    %c1 = arith.constant 1 : index
    %c0_37 = arith.constant 0 : index
    %c0_38 = arith.constant 0 : index
    %80 = vector.load %arg4[%c1, %c0_37, %c0_38] : memref<2x32x128xbf16, #tpu.memory_space<vmem>>, vector<1x32x128xbf16>
    %81 = vector.shape_cast %80 : vector<1x32x128xbf16> to vector<32x128xbf16>
    %c1_39 = arith.constant 1 : index
    %c0_40 = arith.constant 0 : index
    %c0_41 = arith.constant 0 : index
    %82 = vector.load %arg5[%c1_39, %c0_40, %c0_41] : memref<2x32x128xbf16, #tpu.memory_space<vmem>>, vector<1x32x128xbf16>
    %83 = vector.shape_cast %82 : vector<1x32x128xbf16> to vector<32x128xbf16>
    %c1_42 = arith.constant 1 : index
    %c0_43 = arith.constant 0 : index
    %c0_44 = arith.constant 0 : index
    %84 = vector.load %arg6[%c1_42, %c0_43, %c0_44] : memref<2x1x128xf32, #tpu.memory_space<vmem>>, vector<1x1x128xf32>
    %85 = vector.shape_cast %84 : vector<1x1x128xf32> to vector<1x128xf32>
    %c0_45 = arith.constant 0 : index
    %c0_46 = arith.constant 0 : index
    %86 = vector.load %arg11[%c0_45, %c0_46] : memref<16x32xf32, #tpu.memory_space<vmem>>, vector<16x32xf32>
    %87 = arith.truncf %86 : vector<16x32xf32> to vector<16x32xbf16>
    %cst_47 = arith.constant dense<0.000000e+00> : vector<16x128xf32>
    %88 = tpu.matmul %87, %81, %cst_47 {dimension_numbers = #tpu.dot_dimension_numbers<[1], [0], [0], [1], [0, 0, 1, 1], [], []>} : vector<16x32xbf16>, vector<32x128xbf16>, vector<16x128xf32> -> vector<16x128xf32>
    %89 = vector.broadcast %85 : vector<1x128xf32> to vector<16x128xf32>
    %90 = arith.addf %88, %89 : vector<16x128xf32>
    %c0_48 = arith.constant 0 : index
    %c0_49 = arith.constant 0 : index
    %91 = vector.load %arg12[%c0_48, %c0_49] : memref<16x128xf32, #tpu.memory_space<vmem>>, vector<16x128xf32>
    tpu.vector_store %arg12[%c0_48, %c0_49], %90 {strides = array<i32>} : memref<16x128xf32, #tpu.memory_space<vmem>>, vector<16x128xf32>,
    %cst_50 = arith.constant 0.000000e+00 : f32
    %92 = vector.broadcast %cst_50 : f32 to vector<8x32xf32>
    %cst_51 = arith.constant 0.000000e+00 : f32
    %93 = vector.broadcast %cst_51 : f32 to vector<8x32xf32>
    %c0_i32_52 = arith.constant 0 : i32
    %c8_i32_53 = arith.constant 8 : i32
    %94 = arith.muli %c0_i32_52, %c8_i32_53 : i32
    %95 = tpu.assume_multiple %94, 8 : i32
    %96 = arith.index_cast %95 : i32 to index
    %c0_54 = arith.constant 0 : index
    %97 = vector.load %arg12[%96, %c0_54] : memref<16x128xf32, #tpu.memory_space<vmem>>, vector<8x128xf32>
    %98 = arith.truncf %92 : vector<8x32xf32> to vector<8x32xbf16>
    %cst_55 = arith.constant dense<0.000000e+00> : vector<8x128xf32>
    %99 = tpu.matmul %98, %83, %cst_55 {dimension_numbers = #tpu.dot_dimension_numbers<[1], [0], [0], [1], [0, 0, 1, 1], [], []>} : vector<8x32xbf16>, vector<32x128xbf16>, vector<8x128xf32> -> vector<8x128xf32>
    %100 = arith.addf %97, %99 : vector<8x128xf32>
    %101 = arith.negf %100 : vector<8x128xf32>
    %102 = math.exp %101 : vector<8x128xf32>
    %cst_56 = arith.constant 1.000000e+00 : f32
    %103 = vector.broadcast %cst_56 : f32 to vector<8x128xf32>
    %104 = arith.addf %103, %102 : vector<8x128xf32>
    %105 = arith.divf %103, %104 : vector<8x128xf32>
    %106 = math.tanh %100 : vector<8x128xf32>
    %107 = vector.extract_strided_slice %105 {offsets = [0, 0], sizes = [8, 32], strides = [1, 1]} : vector<8x128xf32> to vector<8x32xf32>
    %108 = vector.extract_strided_slice %105 {offsets = [0, 32], sizes = [8, 32], strides = [1, 1]} : vector<8x128xf32> to vector<8x32xf32>
    %109 = vector.extract_strided_slice %106 {offsets = [0, 64], sizes = [8, 32], strides = [1, 1]} : vector<8x128xf32> to vector<8x32xf32>
    %110 = vector.extract_strided_slice %105 {offsets = [0, 96], sizes = [8, 32], strides = [1, 1]} : vector<8x128xf32> to vector<8x32xf32>
    %111 = arith.mulf %108, %93 : vector<8x32xf32>
    %112 = arith.mulf %107, %109 : vector<8x32xf32>
    %113 = arith.addf %111, %112 : vector<8x32xf32>
    %114 = math.tanh %113 : vector<8x32xf32>
    %115 = arith.mulf %110, %114 : vector<8x32xf32>
    %116 = arith.index_cast %95 : i32 to index
    %c0_57 = arith.constant 0 : index
    %117 = vector.load %arg11[%116, %c0_57] : memref<16x32xf32, #tpu.memory_space<vmem>>, vector<8x32xf32>
    %118 = arith.addf %117, %115 : vector<8x32xf32>
    %119 = arith.index_cast %95 : i32 to index
    %c0_58 = arith.constant 0 : index
    %120 = vector.load %arg10[%119, %c0_58] : memref<16x32xf32, #tpu.memory_space<vmem>>, vector<8x32xf32>
    tpu.vector_store %arg10[%119, %c0_58], %118 {strides = array<i32>} : memref<16x32xf32, #tpu.memory_space<vmem>>, vector<8x32xf32>,
    %c1_i32_59 = arith.constant 1 : i32
    %c8_i32_60 = arith.constant 8 : i32
    %121 = arith.muli %c1_i32_59, %c8_i32_60 : i32
    %122 = tpu.assume_multiple %121, 8 : i32
    %123 = arith.index_cast %122 : i32 to index
    %c0_61 = arith.constant 0 : index
    %124 = vector.load %arg12[%123, %c0_61] : memref<16x128xf32, #tpu.memory_space<vmem>>, vector<8x128xf32>
    %125 = arith.truncf %115 : vector<8x32xf32> to vector<8x32xbf16>
    %cst_62 = arith.constant dense<0.000000e+00> : vector<8x128xf32>
    %126 = tpu.matmul %125, %83, %cst_62 {dimension_numbers = #tpu.dot_dimension_numbers<[1], [0], [0], [1], [0, 0, 1, 1], [], []>} : vector<8x32xbf16>, vector<32x128xbf16>, vector<8x128xf32> -> vector<8x128xf32>
    %127 = arith.addf %124, %126 : vector<8x128xf32>
    %128 = arith.negf %127 : vector<8x128xf32>
    %129 = math.exp %128 : vector<8x128xf32>
    %cst_63 = arith.constant 1.000000e+00 : f32
    %130 = vector.broadcast %cst_63 : f32 to vector<8x128xf32>
    %131 = arith.addf %130, %129 : vector<8x128xf32>
    %132 = arith.divf %130, %131 : vector<8x128xf32>
    %133 = math.tanh %127 : vector<8x128xf32>
    %134 = vector.extract_strided_slice %132 {offsets = [0, 0], sizes = [8, 32], strides = [1, 1]} : vector<8x128xf32> to vector<8x32xf32>
    %135 = vector.extract_strided_slice %132 {offsets = [0, 32], sizes = [8, 32], strides = [1, 1]} : vector<8x128xf32> to vector<8x32xf32>
    %136 = vector.extract_strided_slice %133 {offsets = [0, 64], sizes = [8, 32], strides = [1, 1]} : vector<8x128xf32> to vector<8x32xf32>
    %137 = vector.extract_strided_slice %132 {offsets = [0, 96], sizes = [8, 32], strides = [1, 1]} : vector<8x128xf32> to vector<8x32xf32>
    %138 = arith.mulf %135, %113 : vector<8x32xf32>
    %139 = arith.mulf %134, %136 : vector<8x32xf32>
    %140 = arith.addf %138, %139 : vector<8x32xf32>
    %141 = math.tanh %140 : vector<8x32xf32>
    %142 = arith.mulf %137, %141 : vector<8x32xf32>
    %143 = arith.index_cast %122 : i32 to index
    %c0_64 = arith.constant 0 : index
    %144 = vector.load %arg11[%143, %c0_64] : memref<16x32xf32, #tpu.memory_space<vmem>>, vector<8x32xf32>
    %145 = arith.addf %144, %142 : vector<8x32xf32>
    %146 = arith.index_cast %122 : i32 to index
    %c0_65 = arith.constant 0 : index
    %147 = vector.load %arg10[%146, %c0_65] : memref<16x32xf32, #tpu.memory_space<vmem>>, vector<8x32xf32>
    tpu.vector_store %arg10[%146, %c0_65], %145 {strides = array<i32>} : memref<16x32xf32, #tpu.memory_space<vmem>>, vector<8x32xf32>,
    %c2_i32_66 = arith.constant 2 : i32
    %c0_67 = arith.constant 0 : index
    %c0_68 = arith.constant 0 : index
    %148 = vector.load %arg10[%c0_67, %c0_68] : memref<16x32xf32, #tpu.memory_space<vmem>>, vector<16x32xf32>
    %149 = arith.truncf %148 : vector<16x32xf32> to vector<16x32xbf16>
    %c0_69 = arith.constant 0 : index
    %c0_70 = arith.constant 0 : index
    %150 = vector.load %arg7[%c0_69, %c0_70] : memref<32x128xbf16, #tpu.memory_space<vmem>>, vector<32x128xbf16>
    %cst_71 = arith.constant dense<0.000000e+00> : vector<16x128xf32>
    %151 = tpu.matmul %149, %150, %cst_71 {dimension_numbers = #tpu.dot_dimension_numbers<[1], [0], [0], [1], [0, 0, 1, 1], [], []>} : vector<16x32xbf16>, vector<32x128xbf16>, vector<16x128xf32> -> vector<16x128xf32>
    %c0_72 = arith.constant 0 : index
    %c0_73 = arith.constant 0 : index
    %152 = vector.load %arg8[%c0_72, %c0_73] : memref<1x128xf32, #tpu.memory_space<vmem>>, vector<1x128xf32>
    %153 = vector.broadcast %152 : vector<1x128xf32> to vector<16x128xf32>
    %154 = arith.addf %151, %153 : vector<16x128xf32>
    %c0_74 = arith.constant 0 : index
    %c0_75 = arith.constant 0 : index
    %155 = vector.load %arg9[%c0_74, %c0_75] : memref<16x128xf32, #tpu.memory_space<vmem>>, vector<16x128xf32>
    tpu.vector_store %arg9[%c0_74, %c0_75], %154 {strides = array<i32>} : memref<16x128xf32, #tpu.memory_space<vmem>>, vector<16x128xf32>,
    return
  }
}

</mosaic_0001>

<llo_original>
// kernel: tpu_custom_call.1
$region0: #{tpu_custom_call.1}
  #allocation0 [shape = 'u32[]', space=smem, size = 0x4, offset = 0x4, fixed_abs, tag = 'smem constant byte address 0x4 - core index']
  #allocation1 [shape = 'u32[72,128]{1,0:T(1,128)}', space=vmem, size = 0x9000, scoped, tag = 'internal scratch']
  #allocation2 [shape = 'f32[16,32]{1,0:T(8,128)}', space=vmem, size = 0x2000, scoped, tag = 'scratch operand']
  #allocation3 [shape = 'f32[16,32]{1,0:T(8,128)}', space=vmem, size = 0x2000, scoped, tag = 'scratch operand']
  #allocation4 [shape = 'f32[16,128]{1,0:T(8,128)}', space=vmem, size = 0x2000, scoped, tag = 'scratch operand']
  %s0 = inlined_call_operand.vmem [shape: f32[16,4], index: 0, kind: input, shape index: {}]
  %s1 = inlined_call_operand.vmem [shape: f32[16,32], index: 1, kind: input, shape index: {}]
  %s2 = inlined_call_operand.vmem [shape: bf16[4,32], index: 2, kind: input, shape index: {}]
  %s3 = inlined_call_operand.vmem [shape: f32[1,32], index: 3, kind: input, shape index: {}]
  %s4 = inlined_call_operand.hbm [shape: bf16[2,32,128], index: 4, kind: input, shape index: {}]
  %s5 = inlined_call_operand.hbm [shape: bf16[2,32,128], index: 5, kind: input, shape index: {}]
  %s6 = inlined_call_operand.vmem [shape: f32[2,1,128], index: 6, kind: input, shape index: {}]
  %s7 = inlined_call_operand.hbm [shape: bf16[32,128], index: 7, kind: input, shape index: {}]
  %s8 = inlined_call_operand.vmem [shape: f32[1,128], index: 8, kind: input, shape index: {}]
  %s9 = inlined_call_operand.hbm [shape: f32[16,128], index: 9, kind: output, shape index: {}]
  %s10 = sld [smem:[#allocation0]]
  $region58: #{tpu_custom_call.1} parent=0
    _
  %s12 = ssub.s32 1, %s10
  %s13 = scalar_select 0, %s12, %s10
  $region1: #{tpu_custom_call.1} parent=0
    #allocation5 [shape = 'u8[16384]{0}', space=vmem, size = 0x4000, scoped, tag = 'input window, operand 4, single buffered']
    #allocation6 [shape = 's32[1]{0}', space=sflag, size = 0x4, scoped, tag = 'scoped memory for tpu_custom_call.1']
    #allocation7 [shape = 's32[1]{0}', space=sflag, size = 0x4, scoped, tag = 'scoped memory for tpu_custom_call.1']
    #allocation8 [shape = 'u8[16384]{0}', space=vmem, size = 0x4000, scoped, tag = 'input window, operand 5, single buffered']
    #allocation9 [shape = 's32[1]{0}', space=sflag, size = 0x4, scoped, tag = 'scoped memory for tpu_custom_call.1']
    #allocation10 [shape = 'u8[8192]{0}', space=vmem, size = 0x2000, scoped, tag = 'input window, operand 7, single buffered']
    #allocation11 [shape = 'u8[8192]{0}', space=vmem, size = 0x2000, scoped, tag = 'output window, operand 0, single buffered']
    %14 = vsyncpa [#allocation6], 0
    %15 = vsyncpa [#allocation9], 0
    %16 = vsyncpa [#allocation7], 0
    // Predicated region
    $region2: #{tpu_custom_call.1} parent=1 // pred_check
      _
    $region3: #{tpu_custom_call.1} parent=1 // pred_check_branch
      %18 = sbr.rel (0) target = $region5
    $region4: #{tpu_custom_call.1} parent=1 // pred_region
      _
    $region5: #{tpu_custom_call.1} parent=1 // pred_fallthru
      _
    // Predicated region
    $region6: #{tpu_custom_call.1} parent=1 // pred_check
      _
    $region7: #{tpu_custom_call.1} parent=1 // pred_check_branch
      %20 = sbr.rel (0) target = $region9
    $region8: #{tpu_custom_call.1} parent=1 // pred_region
      _
    $region9: #{tpu_custom_call.1} parent=1 // pred_fallthru
      _
    // Predicated region
    $region10: #{tpu_custom_call.1} parent=1 // pred_check
      _
    $region11: #{tpu_custom_call.1} parent=1 // pred_check_branch
      %22 = sbr.rel (0) target = $region13
    $region12: #{tpu_custom_call.1} parent=1 // pred_region
      _
    $region13: #{tpu_custom_call.1} parent=1 // pred_fallthru
      _
    // Predicated region
    $region14: #{tpu_custom_call.1} parent=1 // pred_check
      _
    $region15: #{tpu_custom_call.1} parent=1 // pred_check_branch
      %24 = sbr.rel (0) target = $region17
    $region16: #{tpu_custom_call.1} parent=1 // pred_region
      _
    $region17: #{tpu_custom_call.1} parent=1 // pred_fallthru
      _
    // Predicated region
    $region18: #{tpu_custom_call.1} parent=1 // pred_check
      _
    $region19: #{tpu_custom_call.1} parent=1 // pred_check_branch
      %26 = sbr.rel (0) target = $region21
    $region20: #{tpu_custom_call.1} parent=1 // pred_region
      %28 = vsyncadd [#allocation6], 0
      %s29 = sshll.u32 %s4, 4
      %s30 = int_to_ptr.hbm [resolvable:$true] %s29
      %s31 = sshll.u32 [#allocation5], 4
      %s32 = int_to_ptr.vmem [resolvable:$true] %s31
      %37 = dma.hbm_to_vmem [thread:$0]  %s30, 512, %s32, [#allocation6], 64, 64, 4
    $region21: #{tpu_custom_call.1} parent=1 // pred_fallthru
      _
    // Predicated region
    $region22: #{tpu_custom_call.1} parent=1 // pred_check
      _
    $region23: #{tpu_custom_call.1} parent=1 // pred_check_branch
      %39 = sbr.rel (0) target = $region25
    $region24: #{tpu_custom_call.1} parent=1 // pred_region
      %41 = vsyncadd [#allocation9], 0
      %s42 = sshll.u32 %s5, 4
      %s43 = int_to_ptr.hbm [resolvable:$true] %s42
      %s44 = sshll.u32 [#allocation8], 4
      %s45 = int_to_ptr.vmem [resolvable:$true] %s44
      %50 = dma.hbm_to_vmem [thread:$0]  %s43, 512, %s45, [#allocation9], 64, 64, 4
    $region25: #{tpu_custom_call.1} parent=1 // pred_fallthru
      _
    // Predicated region
    $region26: #{tpu_custom_call.1} parent=1 // pred_check
      _
    $region27: #{tpu_custom_call.1} parent=1 // pred_check_branch
      %52 = sbr.rel (0) target = $region29
    $region28: #{tpu_custom_call.1} parent=1 // pred_region
      _
    $region29: #{tpu_custom_call.1} parent=1 // pred_fallthru
      _
    // Predicated region
    $region30: #{tpu_custom_call.1} parent=1 // pred_check
      _
    $region31: #{tpu_custom_call.1} parent=1 // pred_check_branch
      %54 = sbr.rel (0) target = $region33
    $region32: #{tpu_custom_call.1} parent=1 // pred_region
      %56 = vsyncadd [#allocation9], 0
      %s57 = sshll.u32 %s7, 4
      %s58 = int_to_ptr.hbm [resolvable:$true] %s57
      %s59 = sshll.u32 [#allocation10], 4
      %s60 = int_to_ptr.vmem [resolvable:$true] %s59
      %65 = dma.hbm_to_vmem [thread:$0]  %s58, 256, %s60, [#allocation9], 64, 64, 4
    $region33: #{tpu_custom_call.1} parent=1 // pred_fallthru
      _
    // Predicated region
    $region34: #{tpu_custom_call.1} parent=1 // pred_check
      _
    $region35: #{tpu_custom_call.1} parent=1 // pred_check_branch
      %67 = sbr.rel (0) target = $region37
    $region36: #{tpu_custom_call.1} parent=1 // pred_region
      _
    $region37: #{tpu_custom_call.1} parent=1 // pred_fallthru
      _
    // Predicated region
    $region38: #{tpu_custom_call.1} parent=1 // pred_check
      _
    $region39: #{tpu_custom_call.1} parent=1 // pred_check_branch
      %69 = sbr.rel (0) target = $region41
    $region40: #{tpu_custom_call.1} parent=1 // pred_region
      %71 = dma.done [#allocation6], 512
    $region41: #{tpu_custom_call.1} parent=1 // pred_fallthru
      _
    // Predicated region
    $region42: #{tpu_custom_call.1} parent=1 // pred_check
      _
    $region43: #{tpu_custom_call.1} parent=1 // pred_check_branch
      %73 = sbr.rel (0) target = $region45
    $region44: #{tpu_custom_call.1} parent=1 // pred_region
      %75 = dma.done [#allocation9], 512
    $region45: #{tpu_custom_call.1} parent=1 // pred_fallthru
      _
    // Predicated region
    $region46: #{tpu_custom_call.1} parent=1 // pred_check
      _
    $region47: #{tpu_custom_call.1} parent=1 // pred_check_branch
      %77 = sbr.rel (0) target = $region49
    $region48: #{tpu_custom_call.1} parent=1 // pred_region
      %79 = dma.done [#allocation9], 256
    $region49: #{tpu_custom_call.1} parent=1 // pred_fallthru
      _
    %v81 = vld [vmem:[%s0] sm:$0xff]
    %v82 = vld [vmem:[%s0 + $0x8] sm:$0xff]
    %v83 = vpack.c.bf16 %v82, %v81
    %v84 = vld [vmem:[%s2] sm:$0x3]
    %v85 = vld [vmem:[%s3] sm:$0x1]
    %v87 = vperm.slane %v85, 0
    %vm89 = vcmask 31744
    %v91 = vsel %vm89, %v83, 0
    %vm93 = vcmask 1041408
    %v95 = vsel %vm93, %v84, 0
    %97 = vmatpush.bf16.msra.mxu0 0
    %98 = vmatpush.bf16.msra.mxu0 0
    %99 = vmatpush.bf16.msra.mxu0 0
    %100 = vmatpush.bf16.msra.mxu0 0
    %101 = vmatpush.bf16.msra.mxu0 0
    %102 = vmatpush.bf16.msra.mxu0 0
    %103 = vmatpush.bf16.msra.mxu0 0
    %104 = vmatpush.bf16.msra.mxu0 %v95
    %105 = vmatmul.bf16.gmra.mxu0 %v91
    %v106 = vpop.f32.mrf.mxu0
    %v107 = vadd.f32 %v87, %v106
    %v108 = vpop.f32.mrf.mxu0
    %v109 = vadd.f32 %v87, %v108
    %110 = vdwg.mxu0
    %v111 = vld [vmem:[%s1] sm:$0xff]
    %v112 = vld [vmem:[%s1 + $0x8] sm:$0xff]
    %v113 = vadd.f32 %v107, %v111
    %v114 = vadd.f32 %v109, %v112
    %v115 = vmax.f32 %v113, 0.0
    %v116 = vmax.f32 %v114, 0.0
    %vm117 = vcmask 261120
    %118 = vst.msk [vmem:[#allocation2] sm:$0xff] %vm117, %v115
    %119 = vst.msk [vmem:[#allocation2 + $0x8] sm:$0xff] %vm117, %v116
    %v120 = vld [vmem:[#allocation5] sm:$0xf]
    %v121 = vld [vmem:[#allocation5 + $0x4] sm:$0xf]
    %v122 = vld [vmem:[#allocation5 + $0x8] sm:$0xf]
    %v123 = vld [vmem:[#allocation5 + $0xc] sm:$0xf]
    %v124 = vld [vmem:[#allocation8] sm:$0xf]
    %v125 = vld [vmem:[#allocation8 + $0x4] sm:$0xf]
    %v126 = vld [vmem:[#allocation8 + $0x8] sm:$0xf]
    %v127 = vld [vmem:[#allocation8 + $0xc] sm:$0xf]
    %v128 = vld [vmem:[%s6] sm:$0x1]
    %v129 = vld [vmem:[#allocation2] sm:$0xff]
    %v130 = vld [vmem:[#allocation2 + $0x8] sm:$0xff]
    %v131 = vpack.c.bf16 %v130, %v129
    %v133 = vperm.slane %v128, 0
    %v139 = vunpack.c.l.b16 %v120
    %v140 = vunpack.c.l.b16 %v121
    %v141 = vunpack.c.l.b16 %v122
    %v142 = vunpack.c.l.b16 %v123
    %v143 = vpack.c.b16 %v140, %v139
    %v144 = vpack.c.b16 %v142, %v141
    %v148 = vsel %vm117, %v131, 0
    %150 = vmatpush.bf16.msra.mxu0 0
    %151 = vmatpush.bf16.msra.mxu0 0
    %152 = vmatpush.bf16.msra.mxu0 0
    %153 = vmatpush.bf16.msra.mxu0 0
    %154 = vmatpush.bf16.msra.mxu0 0
    %155 = vmatpush.bf16.msra.mxu0 0
    %156 = vmatpush.bf16.msra.mxu0 %v144
    %157 = vmatpush.bf16.msra.mxu0 %v143
    %158 = vmatmul.bf16.gmra.mxu0 %v148
    %v159 = vpop.f32.mrf.mxu0
    %v160 = vadd.f32 %v133, %v159
    %v161 = vpop.f32.mrf.mxu0
    %v162 = vadd.f32 %v133, %v161
    %163 = vdwg.mxu0
    %164 = vst [vmem:[#allocation4] sm:$0xff] %v160
    %165 = vst [vmem:[#allocation4 + $0x8] sm:$0xff] %v162
    %v166 = vld [vmem:[#allocation4] sm:$0xff]
    %v171 = vunpack.c.l.b16 %v124
    %v172 = vunpack.c.l.b16 %v125
    %v173 = vunpack.c.l.b16 %v126
    %v174 = vunpack.c.l.b16 %v127
    %v175 = vpack.c.b16 %v172, %v171
    %v176 = vpack.c.b16 %v174, %v173
    %v180 = vsel %vm117, 0, 0
    %182 = vmatpush.bf16.msra.mxu0 0
    %183 = vmatpush.bf16.msra.mxu0 0
    %184 = vmatpush.bf16.msra.mxu0 0
    %185 = vmatpush.bf16.msra.mxu0 0
    %186 = vmatpush.bf16.msra.mxu0 0
    %187 = vmatpush.bf16.msra.mxu0 0
    %188 = vmatpush.bf16.msra.mxu0 %v176
    %189 = vmatpush.bf16.msra.mxu0 %v175
    %190 = vmatmul.bf16.gmra.mxu0 %v180
    %v191 = vpop.f32.mrf.mxu0
    %v192 = vadd.f32 0.0, %v191
    %v193 = vpop.f32.mrf.mxu0
    %194 = vdwg.mxu0
    %v195 = vadd.f32 %v166, %v192
    %v196 = vxor.u32 %v195, 2147483648
    %v197 = vmul.f32 %v196, 1.442695
    %v198 = vpow.pop %v197
    %v199 = vadd.f32 %v198, 1.0
    %v200 = vrcp.pop %v199
    %v201 = vmul.f32 %v199, %v200
    %v202 = vsub.f32 1.0, %v201
    %v203 = vmul.f32 %v200, %v202
    %v204 = vadd.f32 %v200, %v203
    %vm205 = vweird.f32 %v199
    %vm206 = vweird.f32 %v200
    %vm207 = vmor %vm205, %vm206
    %v208 = vsel %vm207, %v200, %v204
    %v209 = vand.u32 2147483647, %v199
    %vm210 = vcmp.eq.f32.partialorder %v209, 8.507059e+37
    %v211 = vand.u32 %v199, 2147483648
    %v212 = vor.u32 1.1754944e-38, %v211
    %v213 = vsel %vm210, %v212, %v208
    %v214 = vmul.f32 1.0, %v213
    %v215 = vtanh.pop %v195
    %v216 = vmul.f32 %v214, 0.0
    %218 = vrot.lane.b32.xlu0 %v215, 64
    %v219 = vpop.permute.xlu0 %218
    %v221 = vmul.f32 %v214, %v219
    %223 = vrot.lane.b32.xlu0 %v221, 32
    %v224 = vpop.permute.xlu0 %223
    %v226 = vadd.f32 %v216, %v224
    %v227 = vtanh.pop %v226
    %229 = vrot.lane.b32.xlu0 %v227, 64
    %v230 = vpop.permute.xlu0 %229
    %v232 = vmul.f32 %v214, %v230
    %v233 = vld [vmem:[#allocation2] sm:$0xff]
    %235 = vrot.lane.b32.xlu0 %v232, 32
    %v236 = vpop.permute.xlu0 %235
    %v238 = vadd.f32 %v233, %v236
    %239 = vst.msk [vmem:[#allocation3] sm:$0xff] %vm117, %v238
    %s240 = scalar_lea.vmem [#allocation4], 8
    %v241 = vld [vmem:[%s240] sm:$0xff]
    %v242 = vpack.c.bf16 %v232, %v232
    %244 = vrot.lane.b32.xlu0 %v242, 32
    %v245 = vpop.permute.xlu0 %244
    %v247 = vsel %vm117, %v245, 0
    %249 = vmatpush.bf16.msra.mxu0 0
    %250 = vmatpush.bf16.msra.mxu0 0
    %251 = vmatpush.bf16.msra.mxu0 0
    %252 = vmatpush.bf16.msra.mxu0 0
    %253 = vmatpush.bf16.msra.mxu0 0
    %254 = vmatpush.bf16.msra.mxu0 0
    %255 = vmatpush.bf16.msra.mxu0 %v176
    %256 = vmatpush.bf16.msra.mxu0 %v175
    %257 = vmatmul.bf16.gmra.mxu0 %v247
    %v258 = vpop.f32.mrf.mxu0
    %v259 = vadd.f32 0.0, %v258
    %v260 = vpop.f32.mrf.mxu0
    %261 = vdwg.mxu0
    %v262 = vadd.f32 %v241, %v259
    %v263 = vxor.u32 %v262, 2147483648
    %v264 = vmul.f32 %v263, 1.442695
    %v265 = vpow.pop %v264
    %v266 = vadd.f32 %v265, 1.0
    %v267 = vrcp.pop %v266
    %v268 = vmul.f32 %v266, %v267
    %v269 = vsub.f32 1.0, %v268
    %v270 = vmul.f32 %v267, %v269
    %v271 = vadd.f32 %v267, %v270
    %vm272 = vweird.f32 %v266
    %vm273 = vweird.f32 %v267
    %vm274 = vmor %vm272, %vm273
    %v275 = vsel %vm274, %v267, %v271
    %v276 = vand.u32 2147483647, %v266
    %vm277 = vcmp.eq.f32.partialorder %v276, 8.507059e+37
    %v278 = vand.u32 %v266, 2147483648
    %v279 = vor.u32 1.1754944e-38, %v278
    %v280 = vsel %vm277, %v279, %v275
    %v281 = vmul.f32 1.0, %v280
    %v282 = vtanh.pop %v262
    %v283 = vmul.f32 %v281, %v226
    %285 = vrot.lane.b32.xlu0 %v282, 64
    %v286 = vpop.permute.xlu0 %285
    %v288 = vmul.f32 %v281, %v286
    %290 = vrot.lane.b32.xlu0 %v288, 32
    %v291 = vpop.permute.xlu0 %290
    %v293 = vadd.f32 %v283, %v291
    %v294 = vtanh.pop %v293
    %296 = vrot.lane.b32.xlu0 %v294, 64
    %v297 = vpop.permute.xlu0 %296
    %v299 = vmul.f32 %v281, %v297
    %s300 = scalar_lea.vmem [#allocation2], 8
    %v301 = vld [vmem:[%s300] sm:$0xff]
    %303 = vrot.lane.b32.xlu0 %v299, 32
    %v304 = vpop.permute.xlu0 %303
    %v306 = vadd.f32 %v301, %v304
    %s307 = scalar_lea.vmem [#allocation3], 8
    %308 = vst.msk [vmem:[%s307] sm:$0xff] %vm117, %v306
    %s309 = scalar_lea.vmem [#allocation5], 16
    %v310 = vld [vmem:[%s309] sm:$0xf]
    %v311 = vld [vmem:[%s309 + $0x4] sm:$0xf]
    %v312 = vld [vmem:[%s309 + $0x8] sm:$0xf]
    %v313 = vld [vmem:[%s309 + $0xc] sm:$0xf]
    %s314 = scalar_lea.vmem [#allocation8], 16
    %v315 = vld [vmem:[%s314] sm:$0xf]
    %v316 = vld [vmem:[%s314 + $0x4] sm:$0xf]
    %v317 = vld [vmem:[%s314 + $0x8] sm:$0xf]
    %v318 = vld [vmem:[%s314 + $0xc] sm:$0xf]
    %s319 = scalar_lea.vmem %s6, 1
    %v320 = vld [vmem:[%s319] sm:$0x1]
    %v321 = vld [vmem:[#allocation3] sm:$0xff]
    %v322 = vld [vmem:[#allocation3 + $0x8] sm:$0xff]
    %v323 = vpack.c.bf16 %v322, %v321
    %v325 = vperm.slane %v320, 0
    %v331 = vunpack.c.l.b16 %v310
    %v332 = vunpack.c.l.b16 %v311
    %v333 = vunpack.c.l.b16 %v312
    %v334 = vunpack.c.l.b16 %v313
    %v335 = vpack.c.b16 %v332, %v331
    %v336 = vpack.c.b16 %v334, %v333
    %v340 = vsel %vm117, %v323, 0
    %342 = vmatpush.bf16.msra.mxu0 0
    %343 = vmatpush.bf16.msra.mxu0 0
    %344 = vmatpush.bf16.msra.mxu0 0
    %345 = vmatpush.bf16.msra.mxu0 0
    %346 = vmatpush.bf16.msra.mxu0 0
    %347 = vmatpush.bf16.msra.mxu0 0
    %348 = vmatpush.bf16.msra.mxu0 %v336
    %349 = vmatpush.bf16.msra.mxu0 %v335
    %350 = vmatmul.bf16.gmra.mxu0 %v340
    %v351 = vpop.f32.mrf.mxu0
    %v352 = vadd.f32 %v325, %v351
    %v353 = vpop.f32.mrf.mxu0
    %v354 = vadd.f32 %v325, %v353
    %355 = vdwg.mxu0
    %356 = vst [vmem:[#allocation4] sm:$0xff] %v352
    %357 = vst [vmem:[#allocation4 + $0x8] sm:$0xff] %v354
    %v358 = vld [vmem:[#allocation4] sm:$0xff]
    %v363 = vunpack.c.l.b16 %v315
    %v364 = vunpack.c.l.b16 %v316
    %v365 = vunpack.c.l.b16 %v317
    %v366 = vunpack.c.l.b16 %v318
    %v367 = vpack.c.b16 %v364, %v363
    %v368 = vpack.c.b16 %v366, %v365
    %371 = vmatpush.bf16.msra.mxu0 0
    %372 = vmatpush.bf16.msra.mxu0 0
    %373 = vmatpush.bf16.msra.mxu0 0
    %374 = vmatpush.bf16.msra.mxu0 0
    %375 = vmatpush.bf16.msra.mxu0 0
    %376 = vmatpush.bf16.msra.mxu0 0
    %377 = vmatpush.bf16.msra.mxu0 %v368
    %378 = vmatpush.bf16.msra.mxu0 %v367
    %379 = vmatmul.bf16.gmra.mxu0 %v180
    %v380 = vpop.f32.mrf.mxu0
    %v381 = vadd.f32 0.0, %v380
    %v382 = vpop.f32.mrf.mxu0
    %383 = vdwg.mxu0
    %v384 = vadd.f32 %v358, %v381
    %v385 = vxor.u32 %v384, 2147483648
    %v386 = vmul.f32 %v385, 1.442695
    %v387 = vpow.pop %v386
    %v388 = vadd.f32 %v387, 1.0
    %v389 = vrcp.pop %v388
    %v390 = vmul.f32 %v388, %v389
    %v391 = vsub.f32 1.0, %v390
    %v392 = vmul.f32 %v389, %v391
    %v393 = vadd.f32 %v389, %v392
    %vm394 = vweird.f32 %v388
    %vm395 = vweird.f32 %v389
    %vm396 = vmor %vm394, %vm395
    %v397 = vsel %vm396, %v389, %v393
    %v398 = vand.u32 2147483647, %v388
    %vm399 = vcmp.eq.f32.partialorder %v398, 8.507059e+37
    %v400 = vand.u32 %v388, 2147483648
    %v401 = vor.u32 1.1754944e-38, %v400
    %v402 = vsel %vm399, %v401, %v397
    %v403 = vmul.f32 1.0, %v402
    %v404 = vtanh.pop %v384
    %v405 = vmul.f32 %v403, 0.0
    %407 = vrot.lane.b32.xlu0 %v404, 64
    %v408 = vpop.permute.xlu0 %407
    %v410 = vmul.f32 %v403, %v408
    %412 = vrot.lane.b32.xlu0 %v410, 32
    %v413 = vpop.permute.xlu0 %412
    %v415 = vadd.f32 %v405, %v413
    %v416 = vtanh.pop %v415
    %418 = vrot.lane.b32.xlu0 %v416, 64
    %v419 = vpop.permute.xlu0 %418
    %v421 = vmul.f32 %v403, %v419
    %v422 = vld [vmem:[#allocation3] sm:$0xff]
    %424 = vrot.lane.b32.xlu0 %v421, 32
    %v425 = vpop.permute.xlu0 %424
    %v427 = vadd.f32 %v422, %v425
    %428 = vst.msk [vmem:[#allocation2] sm:$0xff] %vm117, %v427
    %v429 = vld [vmem:[%s240] sm:$0xff]
    %v430 = vpack.c.bf16 %v421, %v421
    %432 = vrot.lane.b32.xlu0 %v430, 32
    %v433 = vpop.permute.xlu0 %432
    %v435 = vsel %vm117, %v433, 0
    %437 = vmatpush.bf16.msra.mxu0 0
    %438 = vmatpush.bf16.msra.mxu0 0
    %439 = vmatpush.bf16.msra.mxu0 0
    %440 = vmatpush.bf16.msra.mxu0 0
    %441 = vmatpush.bf16.msra.mxu0 0
    %442 = vmatpush.bf16.msra.mxu0 0
    %443 = vmatpush.bf16.msra.mxu0 %v368
    %444 = vmatpush.bf16.msra.mxu0 %v367
    %445 = vmatmul.bf16.gmra.mxu0 %v435
    %v446 = vpop.f32.mrf.mxu0
    %v447 = vadd.f32 0.0, %v446
    %v448 = vpop.f32.mrf.mxu0
    %449 = vdwg.mxu0
    %v450 = vadd.f32 %v429, %v447
    %v451 = vxor.u32 %v450, 2147483648
    %v452 = vmul.f32 %v451, 1.442695
    %v453 = vpow.pop %v452
    %v454 = vadd.f32 %v453, 1.0
    %v455 = vrcp.pop %v454
    %v456 = vmul.f32 %v454, %v455
    %v457 = vsub.f32 1.0, %v456
    %v458 = vmul.f32 %v455, %v457
    %v459 = vadd.f32 %v455, %v458
    %vm460 = vweird.f32 %v454
    %vm461 = vweird.f32 %v455
    %vm462 = vmor %vm460, %vm461
    %v463 = vsel %vm462, %v455, %v459
    %v464 = vand.u32 2147483647, %v454
    %vm465 = vcmp.eq.f32.partialorder %v464, 8.507059e+37
    %v466 = vand.u32 %v454, 2147483648
    %v467 = vor.u32 1.1754944e-38, %v466
    %v468 = vsel %vm465, %v467, %v463
    %v469 = vmul.f32 1.0, %v468
    %v470 = vtanh.pop %v450
    %v471 = vmul.f32 %v469, %v415
    %473 = vrot.lane.b32.xlu0 %v470, 64
    %v474 = vpop.permute.xlu0 %473
    %v476 = vmul.f32 %v469, %v474
    %478 = vrot.lane.b32.xlu0 %v476, 32
    %v479 = vpop.permute.xlu0 %478
    %v481 = vadd.f32 %v471, %v479
    %v482 = vtanh.pop %v481
    %484 = vrot.lane.b32.xlu0 %v482, 64
    %v485 = vpop.permute.xlu0 %484
    %v487 = vmul.f32 %v469, %v485
    %v488 = vld [vmem:[%s307] sm:$0xff]
    %490 = vrot.lane.b32.xlu0 %v487, 32
    %v491 = vpop.permute.xlu0 %490
    %v493 = vadd.f32 %v488, %v491
    %494 = vst.msk [vmem:[%s300] sm:$0xff] %vm117, %v493
    %v495 = vld [vmem:[#allocation2] sm:$0xff]
    %v496 = vld [vmem:[#allocation2 + $0x8] sm:$0xff]
    %v497 = vpack.c.bf16 %v496, %v495
    %v498 = vld [vmem:[#allocation10] sm:$0xf]
    %v499 = vld [vmem:[#allocation10 + $0x4] sm:$0xf]
    %v500 = vld [vmem:[#allocation10 + $0x8] sm:$0xf]
    %v501 = vld [vmem:[#allocation10 + $0xc] sm:$0xf]
    %v502 = vld [vmem:[%s8] sm:$0x1]
    %v504 = vperm.slane %v502, 0
    %v510 = vunpack.c.l.b16 %v498
    %v511 = vunpack.c.l.b16 %v499
    %v512 = vunpack.c.l.b16 %v500
    %v513 = vunpack.c.l.b16 %v501
    %v514 = vpack.c.b16 %v511, %v510
    %v515 = vpack.c.b16 %v513, %v512
    %v519 = vsel %vm117, %v497, 0
    %521 = vmatpush.bf16.msra.mxu0 0
    %522 = vmatpush.bf16.msra.mxu0 0
    %523 = vmatpush.bf16.msra.mxu0 0
    %524 = vmatpush.bf16.msra.mxu0 0
    %525 = vmatpush.bf16.msra.mxu0 0
    %526 = vmatpush.bf16.msra.mxu0 0
    %527 = vmatpush.bf16.msra.mxu0 %v515
    %528 = vmatpush.bf16.msra.mxu0 %v514
    %529 = vmatmul.bf16.gmra.mxu0 %v519
    %v530 = vpop.f32.mrf.mxu0
    %v531 = vadd.f32 %v504, %v530
    %v532 = vpop.f32.mrf.mxu0
    %v533 = vadd.f32 %v504, %v532
    %534 = vdwg.mxu0
    %535 = vst [vmem:[#allocation11] sm:$0xff] %v531
    %536 = vst [vmem:[#allocation11 + $0x8] sm:$0xff] %v533
    // Predicated region
    $region50: #{tpu_custom_call.1} parent=1 // pred_check
      _
    $region51: #{tpu_custom_call.1} parent=1 // pred_check_branch
      %538 = sbr.rel (0) target = $region53
    $region52: #{tpu_custom_call.1} parent=1 // pred_region
      %540 = vsyncadd [#allocation7], 0
      %s541 = sshll.u32 [#allocation11], 4
      %s542 = int_to_ptr.vmem [resolvable:$true] %s541
      %s543 = sshll.u32 %s9, 4
      %s544 = int_to_ptr.hbm [resolvable:$true] %s543
      %549 = dma.vmem_to_hbm [thread:$0]  %s542, 256, %s544, [#allocation7], 128, 128, 8
    $region53: #{tpu_custom_call.1} parent=1 // pred_fallthru
      _
    // Predicated region
    $region54: #{tpu_custom_call.1} parent=1 // pred_check
      _
    $region55: #{tpu_custom_call.1} parent=1 // pred_check_branch
      %551 = sbr.rel (0) target = $region57
    $region56: #{tpu_custom_call.1} parent=1 // pred_region
      %553 = dma.done [#allocation7], 256
    $region57: #{tpu_custom_call.1} parent=1 // pred_fallthru
      _
    %554 = vsyncpa [#allocation6], 1
    %555 = vsyncpa [#allocation9], 1
    %556 = vsyncpa [#allocation7], 1

</llo_original>
